<compile_context>
chip_gen: v5e
topology: v5e:2x2
jax: 0.10.0
libtpu: 0.0.40
codegen_flags: <defaults>
</compile_context>

<pallas_src>
import functools

import jax
import jax.numpy as jnp
from jax.experimental import pallas as pl
from jax.experimental.pallas import tpu as pltpu

LANE = 128


def _round_up(n, m):
    return ((n + m - 1) // m) * m


def _pad2(x, rows, cols):
    r, c = x.shape
    return jnp.pad(x, ((0, rows - r), (0, cols - c)))


# ------------- Phase 1: h = x @ (W / norm) + b   (row-tiled) ----------------
def _mix_kernel(x_ref, w_ref, b_ref, h_ref):
    """x_ref: (TM1, Dp) f32, w_ref: (Dp, Dp) bf16 (pre-scaled by 1/norm),
    b_ref: (1, Dp) f32, h_ref: (TM1, Dp) bf16 (MXU-ready operand for phase 2)."""
    x = x_ref[...].astype(jnp.bfloat16)          # VPU cast feeding the bf16 MXU path
    h0 = jnp.dot(x, w_ref[...], preferred_element_type=jnp.float32)
    h_ref[...] = (h0 + b_ref[...]).astype(h_ref.dtype)


# ------------- Phase 2: zw = tanh(adj @ h)   (tiled, acc in output) ---------
def _adj_matmul_kernel(adj_ref, h_ref, zw_ref, *, tk):
    """adj_ref: (TM, TK) f32 tile (cast to bf16 in-kernel),
    h_ref: (Nk, Dp) bf16 VMEM-resident slab (constant index_map),
    zw_ref: (TM, Dp) f32 — used directly as the accumulator across the k axis."""
    k = pl.program_id(1)

    @pl.when(k == 0)
    def _():
        zw_ref[...] = jnp.zeros_like(zw_ref)

    a = adj_ref[...].astype(jnp.bfloat16)        # free VPU cast on a mem-bound kernel
    start = pl.multiple_of(k * tk, tk)
    h_tile = h_ref[pl.ds(start, tk), :]
    zw_ref[...] += jnp.dot(a, h_tile, preferred_element_type=jnp.float32)

    @pl.when(k == pl.num_programs(1) - 1)
    def _():
        zw_ref[...] = jnp.tanh(zw_ref[...])


def propagate_unit(adj, xu, xi, static_u, static_i, w, b, *, n_users, n_items):
    # Glue (concat / norm scalar / padding / split) stays in plain JAX.
    last_state = jnp.concatenate([xu, xi], axis=0).astype(jnp.float32)   # (N, D)
    del static_u, static_i  # normalized init_state is never consumed downstream

    N, D = last_state.shape
    assert adj.shape == (N, N)
    Dp = _round_up(D, LANE)                       # lane-dense feature dim

    # Global max row norm: cheap O(N*D) reduction; folded into W so phase 1 is a
    # plain matmul.  norm == 0 -> inf/NaN, matching the PyTorch division.
    inv = jax.lax.rsqrt(jnp.max(jnp.sum(last_state * last_state, axis=1)))

    # Tile sizes.  TK multiple of 128 (lane), TM multiple of 8 (sublane);
    # TM=512 keeps >=2 row tiles for N>=1024 so v7x's two TCs both get work.
    TK = min(1024, _round_up(N, LANE))            # reduction tile (adj cols / h rows)
    TM = min(512, _round_up(N, 8))                # output row tile
    Nk = _round_up(N, TK)                         # padded adj cols / h rows
    Nm = _round_up(N, TM)                         # padded adj rows / out rows

    # Zero padding: padded x rows give h rows == b, but the matching adj columns
    # are zero so they contribute nothing; padded adj rows give tanh(0)=0 rows
    # that are stripped below.
    x_p = _pad2(last_state, Nk, Dp)                                   # f32
    w_p = (_pad2(w.astype(jnp.float32), Dp, Dp) * inv).astype(jnp.bfloat16)
    b_p = _pad2(b.astype(jnp.float32), 1, Dp)                         # f32
    adj_p = _pad2(adj.astype(jnp.float32), Nm, Nk)                    # f32 (cast in-kernel)

    # ---------------- Phase 1: h = x @ W' + b  (row-tiled) ----------------
    TM1 = TK                                       # divides Nk by construction
    h = pl.pallas_call(
        _mix_kernel,
        out_shape=jax.ShapeDtypeStruct((Nk, Dp), jnp.bfloat16),
        grid_spec=pltpu.PrefetchScalarGridSpec(
            num_scalar_prefetch=0,
            grid=(Nk // TM1,),
            in_specs=[
                pl.BlockSpec((TM1, Dp), lambda i: (i, 0)),   # x row tile
                pl.BlockSpec((Dp, Dp), lambda i: (0, 0)),    # W resident
                pl.BlockSpec((1, Dp), lambda i: (0, 0)),     # b resident
            ],
            out_specs=pl.BlockSpec((TM1, Dp), lambda i: (i, 0)),
        ),
        compiler_params=pltpu.CompilerParams(
            dimension_semantics=("parallel",)),
        cost_estimate=pl.CostEstimate(
            flops=2 * Nk * Dp * Dp,
            transcendentals=0,
            bytes_accessed=Nk * Dp * 4 + Dp * Dp * 2 + Dp * 4 + Nk * Dp * 2,
        ),
    )(x_p, w_p, b_p)

    # ---------------- Phase 2: zw = tanh(adj @ h), tiled -------------------
    # adj stays f32 in HBM (no separate cast pass); h is a single VMEM-resident
    # bf16 slab sliced per k step; accumulation directly into the f32 output.
    # TODO(synk): optional follow-up — fuse phase 1 into phase 2 (compute each
    # h k-tile at i==0 into a VMEM scratch) to drop the h HBM roundtrip.
    grid2 = (Nm // TM, Nk // TK)
    est_vmem = (2 * TM * TK * 4          # double-buffered adj f32 tile
                + 2 * Nk * Dp * 2        # h slab (assume 2 buffers, worst case)
                + 2 * TM * Dp * 4        # output block
                + (2 << 20))             # slack
    cp_kwargs = dict(dimension_semantics=("parallel", "arbitrary"))
    if est_vmem > (16 << 20):            # v5e scoped default; harmless otherwise
        cp_kwargs["vmem_limit_bytes"] = est_vmem

    zw = pl.pallas_call(
        functools.partial(_adj_matmul_kernel, tk=TK),
        out_shape=jax.ShapeDtypeStruct((Nm, Dp), jnp.float32),
        grid_spec=pltpu.PrefetchScalarGridSpec(
            num_scalar_prefetch=0,
            grid=grid2,
            in_specs=[
                pl.BlockSpec((TM, TK), lambda i, k: (i, k)),   # adj tile (f32)
                pl.BlockSpec((Nk, Dp), lambda i, k: (0, 0)),   # h resident slab
            ],
            out_specs=pl.BlockSpec((TM, Dp), lambda i, k: (i, 0)),
        ),
        compiler_params=pltpu.CompilerParams(**cp_kwargs),
        cost_estimate=pl.CostEstimate(
            flops=2 * Nm * Nk * Dp,
            transcendentals=Nm * Dp,
            bytes_accessed=Nm * Nk * 4 + Nk * Dp * 2 + Nm * Dp * 4,
        ),
    )(adj_p, h)

    zw = zw[:N, :D]                     # strip row/lane padding
    yu = zw[:n_users]
    yi = zw[n_users:]
    return yu, yi


if __name__ == "__main__":
    n_users, n_items, D = 8, 8, 32
    N = n_users + n_items

    key = jax.random.PRNGKey(0)
    k_adj, k_xu, k_xi, k_su, k_si, k_w, k_b = jax.random.split(key, 7)

    adj = jax.random.uniform(k_adj, (N, N), dtype=jnp.float32)
    xu = jax.random.normal(k_xu, (n_users, D), dtype=jnp.float32)
    xi = jax.random.normal(k_xi, (n_items, D), dtype=jnp.float32)
    static_u = jax.random.normal(k_su, (n_users, D), dtype=jnp.float32)
    static_i = jax.random.normal(k_si, (n_items, D), dtype=jnp.float32)

    # Deterministic WGNN parameters (synthetic, not loaded from a checkpoint).
    w = jax.random.normal(k_w, (D, D), dtype=jnp.float32) * (1.0 / jnp.sqrt(D))
    b = jax.random.normal(k_b, (1, D), dtype=jnp.float32) * 0.01

    yu, yi = propagate_unit(adj, xu, xi, static_u, static_i, w, b,
                            n_users=n_users, n_items=n_items)
    jax.block_until_ready((yu, yi))

    # Pure-JAX f32 reference of the same forward.
    x_full = jnp.concatenate([xu, xi], axis=0)
    norm = jnp.max(jnp.sqrt(jnp.sum(x_full * x_full, axis=1)))
    ref = jnp.tanh(adj @ ((x_full / norm) @ w + b))
    got = jnp.concatenate([yu, yi], axis=0)

    assert yu.shape == (n_users, D) and yi.shape == (n_items, D)
    assert bool(jnp.all(jnp.isfinite(yu))) and bool(jnp.all(jnp.isfinite(yi)))
    # bf16 MXU operands in both matmuls -> loose-ish absolute tolerance on tanh
    # outputs in [-1, 1].
    assert float(jnp.max(jnp.abs(got - ref))) < 5e-2
    print("KERNEL_OK")
</pallas_src>

<mosaic_0001>
module attributes {stable_mosaic.version = 11 : i64} {
  func.func @_mix_kernel(%arg0: i32, %arg1: memref<128x128xf32, #tpu.memory_space<vmem>>, %arg2: memref<128x128xbf16, #tpu.memory_space<vmem>>, %arg3: memref<1x128xf32, #tpu.memory_space<vmem>>, %arg4: memref<128x128xbf16, #tpu.memory_space<vmem>>) attributes {dimension_semantics = [#tpu.dimension_semantics<parallel>], iteration_bounds = array<i64: 1>, scalar_prefetch = 0 : i64, scratch_operands = 0 : i64, tpu.core_type = #tpu.core_type<tc>, window_params = [{transform_indices = @transform_0, window_bounds = array<i64: 128, 128>}, {pipeline_mode = #tpu.pipeline_mode<synchronous>, transform_indices = @transform_1, window_bounds = array<i64: 128, 128>}, {pipeline_mode = #tpu.pipeline_mode<synchronous>, transform_indices = @transform_2, window_bounds = array<i64: 1, 128>}, {transform_indices = @transform_3, window_bounds = array<i64: 128, 128>}]} {
    %c0 = arith.constant 0 : index
    %c0_0 = arith.constant 0 : index
    %0 = vector.load %arg1[%c0, %c0_0] : memref<128x128xf32, #tpu.memory_space<vmem>>, vector<128x128xf32>
    %1 = arith.truncf %0 : vector<128x128xf32> to vector<128x128xbf16>
    %c0_1 = arith.constant 0 : index
    %c0_2 = arith.constant 0 : index
    %2 = vector.load %arg2[%c0_1, %c0_2] : memref<128x128xbf16, #tpu.memory_space<vmem>>, vector<128x128xbf16>
    %cst = arith.constant dense<0.000000e+00> : vector<128x128xf32>
    %3 = tpu.matmul %1, %2, %cst {dimension_numbers = #tpu.dot_dimension_numbers<[1], [0], [0], [1], [0, 0, 1, 1], [], []>} : vector<128x128xbf16>, vector<128x128xbf16>, vector<128x128xf32> -> vector<128x128xf32>
    %c0_3 = arith.constant 0 : index
    %c0_4 = arith.constant 0 : index
    %4 = vector.load %arg3[%c0_3, %c0_4] : memref<1x128xf32, #tpu.memory_space<vmem>>, vector<1x128xf32>
    %5 = vector.broadcast %4 : vector<1x128xf32> to vector<128x128xf32>
    %6 = arith.addf %3, %5 : vector<128x128xf32>
    %7 = arith.truncf %6 : vector<128x128xf32> to vector<128x128xbf16>
    %c0_5 = arith.constant 0 : index
    %c0_6 = arith.constant 0 : index
    %8 = vector.load %arg4[%c0_5, %c0_6] : memref<128x128xbf16, #tpu.memory_space<vmem>>, vector<128x128xbf16>
    tpu.vector_store %arg4[%c0_5, %c0_6], %7 {strides = array<i32>} : memref<128x128xbf16, #tpu.memory_space<vmem>>, vector<128x128xbf16>,
    return
  }
  func.func @transform_0(%arg0: i32) -> (i32, i32) {
    %c0_i32 = arith.constant 0 : i32
    %c0_i32_0 = arith.constant 0 : i32
    return %arg0, %c0_i32 : i32, i32
  }
  func.func @transform_1(%arg0: i32) -> (i32, i32) {
    %c0_i32 = arith.constant 0 : i32
    %c0_i32_0 = arith.constant 0 : i32
    %c0_i32_1 = arith.constant 0 : i32
    return %c0_i32, %c0_i32_0 : i32, i32
  }
  func.func @transform_2(%arg0: i32) -> (i32, i32) {
    %c0_i32 = arith.constant 0 : i32
    %c0_i32_0 = arith.constant 0 : i32
    %c0_i32_1 = arith.constant 0 : i32
    return %c0_i32, %c0_i32_0 : i32, i32
  }
  func.func @transform_3(%arg0: i32) -> (i32, i32) {
    %c0_i32 = arith.constant 0 : i32
    %c0_i32_0 = arith.constant 0 : i32
    return %arg0, %c0_i32 : i32, i32
  }
}

</mosaic_0001>

<llo_original>
// kernel: tpu_custom_call.1
$region0: #{tpu_custom_call.1}
  #allocation0 [shape = 'u32[]', space=smem, size = 0x4, offset = 0x4, fixed_abs, tag = 'smem constant byte address 0x4 - core index']
  #allocation1 [shape = 'u32[72,128]{1,0:T(1,128)}', space=vmem, size = 0x9000, scoped, tag = 'internal scratch']
  %s0 = inlined_call_operand.hbm [shape: f32[128,128], index: 0, kind: input, shape index: {}]
  %s1 = inlined_call_operand.hbm [shape: bf16[128,128], index: 1, kind: input, shape index: {}]
  %s2 = inlined_call_operand.vmem [shape: f32[1,128], index: 2, kind: input, shape index: {}]
  %s3 = inlined_call_operand.hbm [shape: bf16[128,128], index: 3, kind: output, shape index: {}]
  %s4 = sld [smem:[#allocation0]]
  $region30: #{tpu_custom_call.1} parent=0
    _
  %s6 = ssub.s32 1, %s4
  %s7 = scalar_select 0, %s6, %s4
  $region1: #{tpu_custom_call.1} parent=0
    #allocation2 [shape = 'u8[65536]{0}', space=vmem, size = 0x10000, scoped, tag = 'input window, operand 0, single buffered']
    #allocation3 [shape = 's32[1]{0}', space=sflag, size = 0x4, scoped, tag = 'scoped memory for tpu_custom_call.1']
    #allocation4 [shape = 's32[1]{0}', space=sflag, size = 0x4, scoped, tag = 'scoped memory for tpu_custom_call.1']
    #allocation5 [shape = 'u8[32768]{0}', space=vmem, size = 0x8000, scoped, tag = 'input window, operand 1, single buffered']
    #allocation6 [shape = 's32[1]{0}', space=sflag, size = 0x4, scoped, tag = 'scoped memory for tpu_custom_call.1']
    #allocation7 [shape = 'u8[32768]{0}', space=vmem, size = 0x8000, scoped, tag = 'output window, operand 0, single buffered']
    %8 = vsyncpa [#allocation3], 0
    %9 = vsyncpa [#allocation6], 0
    %10 = vsyncpa [#allocation4], 0
    // Predicated region
    $region2: #{tpu_custom_call.1} parent=1 // pred_check
      _
    $region3: #{tpu_custom_call.1} parent=1 // pred_check_branch
      %12 = sbr.rel (0) target = $region5
    $region4: #{tpu_custom_call.1} parent=1 // pred_region
      %14 = vsyncadd [#allocation3], 0
      %s15 = sshll.u32 %s0, 4
      %s16 = int_to_ptr.hbm [resolvable:$true] %s15
      %s17 = sshll.u32 [#allocation2], 4
      %s18 = int_to_ptr.vmem [resolvable:$true] %s17
      %23 = dma.hbm_to_vmem [thread:$0]  %s16, 2048, %s18, [#allocation3], 128, 128, 8
    $region5: #{tpu_custom_call.1} parent=1 // pred_fallthru
      _
    // Predicated region
    $region6: #{tpu_custom_call.1} parent=1 // pred_check
      _
    $region7: #{tpu_custom_call.1} parent=1 // pred_check_branch
      %25 = sbr.rel (0) target = $region9
    $region8: #{tpu_custom_call.1} parent=1 // pred_region
      %27 = vsyncadd [#allocation6], 0
      %s28 = sshll.u32 %s1, 4
      %s29 = int_to_ptr.hbm [resolvable:$true] %s28
      %s30 = sshll.u32 [#allocation5], 4
      %s31 = int_to_ptr.vmem [resolvable:$true] %s30
      %36 = dma.hbm_to_vmem [thread:$0]  %s29, 1024, %s31, [#allocation6], 64, 64, 4
    $region9: #{tpu_custom_call.1} parent=1 // pred_fallthru
      _
    // Predicated region
    $region10: #{tpu_custom_call.1} parent=1 // pred_check
      _
    $region11: #{tpu_custom_call.1} parent=1 // pred_check_branch
      %38 = sbr.rel (0) target = $region13
    $region12: #{tpu_custom_call.1} parent=1 // pred_region
      _
    $region13: #{tpu_custom_call.1} parent=1 // pred_fallthru
      _
    // Predicated region
    $region14: #{tpu_custom_call.1} parent=1 // pred_check
      _
    $region15: #{tpu_custom_call.1} parent=1 // pred_check_branch
      %40 = sbr.rel (0) target = $region17
    $region16: #{tpu_custom_call.1} parent=1 // pred_region
      %42 = dma.done [#allocation3], 2048
    $region17: #{tpu_custom_call.1} parent=1 // pred_fallthru
      _
    // Predicated region
    $region18: #{tpu_custom_call.1} parent=1 // pred_check
      _
    $region19: #{tpu_custom_call.1} parent=1 // pred_check_branch
      %44 = sbr.rel (0) target = $region21
    $region20: #{tpu_custom_call.1} parent=1 // pred_region
      %46 = dma.done [#allocation6], 1024
    $region21: #{tpu_custom_call.1} parent=1 // pred_fallthru
      _
    %v47 = vld [vmem:[#allocation2] sm:$0xff]
    %v48 = vld [vmem:[#allocation2 + $0x8] sm:$0xff]
    %v49 = vld [vmem:[#allocation2 + $0x10] sm:$0xff]
    %v50 = vld [vmem:[#allocation2 + $0x18] sm:$0xff]
    %v51 = vld [vmem:[#allocation2 + $0x20] sm:$0xff]
    %v52 = vld [vmem:[#allocation2 + $0x28] sm:$0xff]
    %v53 = vld [vmem:[#allocation2 + $0x30] sm:$0xff]
    %v54 = vld [vmem:[#allocation2 + $0x38] sm:$0xff]
    %v55 = vld [vmem:[#allocation2 + $0x40] sm:$0xff]
    %v56 = vld [vmem:[#allocation2 + $0x48] sm:$0xff]
    %v57 = vld [vmem:[#allocation2 + $0x50] sm:$0xff]
    %v58 = vld [vmem:[#allocation2 + $0x58] sm:$0xff]
    %v59 = vld [vmem:[#allocation2 + $0x60] sm:$0xff]
    %v60 = vld [vmem:[#allocation2 + $0x68] sm:$0xff]
    %v61 = vld [vmem:[#allocation2 + $0x70] sm:$0xff]
    %v62 = vld [vmem:[#allocation2 + $0x78] sm:$0xff]
    %v63 = vpack.c.bf16 %v48, %v47
    %v64 = vpack.c.bf16 %v50, %v49
    %v65 = vpack.c.bf16 %v52, %v51
    %v66 = vpack.c.bf16 %v54, %v53
    %v67 = vpack.c.bf16 %v56, %v55
    %v68 = vpack.c.bf16 %v58, %v57
    %v69 = vpack.c.bf16 %v60, %v59
    %v70 = vpack.c.bf16 %v62, %v61
    %v71 = vld [vmem:[#allocation5] sm:$0xf]
    %v72 = vld [vmem:[#allocation5 + $0x4] sm:$0xf]
    %v73 = vld [vmem:[#allocation5 + $0x8] sm:$0xf]
    %v74 = vld [vmem:[#allocation5 + $0xc] sm:$0xf]
    %v75 = vld [vmem:[#allocation5 + $0x10] sm:$0xf]
    %v76 = vld [vmem:[#allocation5 + $0x14] sm:$0xf]
    %v77 = vld [vmem:[#allocation5 + $0x18] sm:$0xf]
    %v78 = vld [vmem:[#allocation5 + $0x1c] sm:$0xf]
    %v79 = vld [vmem:[#allocation5 + $0x20] sm:$0xf]
    %v80 = vld [vmem:[#allocation5 + $0x24] sm:$0xf]
    %v81 = vld [vmem:[#allocation5 + $0x28] sm:$0xf]
    %v82 = vld [vmem:[#allocation5 + $0x2c] sm:$0xf]
    %v83 = vld [vmem:[#allocation5 + $0x30] sm:$0xf]
    %v84 = vld [vmem:[#allocation5 + $0x34] sm:$0xf]
    %v85 = vld [vmem:[#allocation5 + $0x38] sm:$0xf]
    %v86 = vld [vmem:[#allocation5 + $0x3c] sm:$0xf]
    %v87 = vld [vmem:[%s2] sm:$0x1]
    %v89 = vperm.slane %v87, 0
    %v107 = vunpack.c.l.b16 %v71
    %v108 = vunpack.c.l.b16 %v72
    %v109 = vunpack.c.l.b16 %v73
    %v110 = vunpack.c.l.b16 %v74
    %v111 = vunpack.c.l.b16 %v75
    %v112 = vunpack.c.l.b16 %v76
    %v113 = vunpack.c.l.b16 %v77
    %v114 = vunpack.c.l.b16 %v78
    %v115 = vunpack.c.l.b16 %v79
    %v116 = vunpack.c.l.b16 %v80
    %v117 = vunpack.c.l.b16 %v81
    %v118 = vunpack.c.l.b16 %v82
    %v119 = vunpack.c.l.b16 %v83
    %v120 = vunpack.c.l.b16 %v84
    %v121 = vunpack.c.l.b16 %v85
    %v122 = vunpack.c.l.b16 %v86
    %v123 = vpack.c.b16 %v108, %v107
    %v124 = vpack.c.b16 %v110, %v109
    %v125 = vpack.c.b16 %v112, %v111
    %v126 = vpack.c.b16 %v114, %v113
    %v127 = vpack.c.b16 %v116, %v115
    %v128 = vpack.c.b16 %v118, %v117
    %v129 = vpack.c.b16 %v120, %v119
    %v130 = vpack.c.b16 %v122, %v121
    %139 = vmatpush.bf16.msra.mxu0 %v130
    %140 = vmatpush.bf16.msra.mxu0 %v129
    %141 = vmatpush.bf16.msra.mxu0 %v128
    %142 = vmatpush.bf16.msra.mxu0 %v127
    %143 = vmatpush.bf16.msra.mxu0 %v126
    %144 = vmatpush.bf16.msra.mxu0 %v125
    %145 = vmatpush.bf16.msra.mxu0 %v124
    %146 = vmatpush.bf16.msra.mxu0 %v123
    %147 = vmatmul.bf16.gmra.mxu0 %v63
    %v148 = vpop.f32.mrf.mxu0
    %v149 = vadd.f32 %v89, %v148
    %v150 = vpop.f32.mrf.mxu0
    %v151 = vadd.f32 %v89, %v150
    %152 = vmatmul.bf16.gmra.mxu0 %v64
    %v153 = vpop.f32.mrf.mxu0
    %v154 = vadd.f32 %v89, %v153
    %v155 = vpop.f32.mrf.mxu0
    %v156 = vadd.f32 %v89, %v155
    %157 = vmatmul.bf16.gmra.mxu0 %v65
    %v158 = vpop.f32.mrf.mxu0
    %v159 = vadd.f32 %v89, %v158
    %v160 = vpop.f32.mrf.mxu0
    %v161 = vadd.f32 %v89, %v160
    %162 = vmatmul.bf16.gmra.mxu0 %v66
    %v163 = vpop.f32.mrf.mxu0
    %v164 = vadd.f32 %v89, %v163
    %v165 = vpop.f32.mrf.mxu0
    %v166 = vadd.f32 %v89, %v165
    %167 = vmatmul.bf16.gmra.mxu0 %v67
    %v168 = vpop.f32.mrf.mxu0
    %v169 = vadd.f32 %v89, %v168
    %v170 = vpop.f32.mrf.mxu0
    %v171 = vadd.f32 %v89, %v170
    %172 = vmatmul.bf16.gmra.mxu0 %v68
    %v173 = vpop.f32.mrf.mxu0
    %v174 = vadd.f32 %v89, %v173
    %v175 = vpop.f32.mrf.mxu0
    %v176 = vadd.f32 %v89, %v175
    %177 = vmatmul.bf16.gmra.mxu0 %v69
    %v178 = vpop.f32.mrf.mxu0
    %v179 = vadd.f32 %v89, %v178
    %v180 = vpop.f32.mrf.mxu0
    %v181 = vadd.f32 %v89, %v180
    %182 = vmatmul.bf16.gmra.mxu0 %v70
    %v183 = vpop.f32.mrf.mxu0
    %v184 = vadd.f32 %v89, %v183
    %v185 = vpop.f32.mrf.mxu0
    %v186 = vadd.f32 %v89, %v185
    %187 = vdwg.mxu0
    %v188 = vpack.c.bf16 %v149, %v149
    %v189 = vpack.c.bf16 %v151, %v151
    %v190 = vpack.c.bf16 %v154, %v154
    %v191 = vpack.c.bf16 %v156, %v156
    %v192 = vpack.c.bf16 %v159, %v159
    %v193 = vpack.c.bf16 %v161, %v161
    %v194 = vpack.c.bf16 %v164, %v164
    %v195 = vpack.c.bf16 %v166, %v166
    %v196 = vpack.c.bf16 %v169, %v169
    %v197 = vpack.c.bf16 %v171, %v171
    %v198 = vpack.c.bf16 %v174, %v174
    %v199 = vpack.c.bf16 %v176, %v176
    %v200 = vpack.c.bf16 %v179, %v179
    %v201 = vpack.c.bf16 %v181, %v181
    %v202 = vpack.c.bf16 %v184, %v184
    %v203 = vpack.c.bf16 %v186, %v186
    %204 = vst [vmem:[#allocation7] sm:$0xf] %v188
    %205 = vst [vmem:[#allocation7 + $0x4] sm:$0xf] %v189
    %206 = vst [vmem:[#allocation7 + $0x8] sm:$0xf] %v190
    %207 = vst [vmem:[#allocation7 + $0xc] sm:$0xf] %v191
    %208 = vst [vmem:[#allocation7 + $0x10] sm:$0xf] %v192
    %209 = vst [vmem:[#allocation7 + $0x14] sm:$0xf] %v193
    %210 = vst [vmem:[#allocation7 + $0x18] sm:$0xf] %v194
    %211 = vst [vmem:[#allocation7 + $0x1c] sm:$0xf] %v195
    %212 = vst [vmem:[#allocation7 + $0x20] sm:$0xf] %v196
    %213 = vst [vmem:[#allocation7 + $0x24] sm:$0xf] %v197
    %214 = vst [vmem:[#allocation7 + $0x28] sm:$0xf] %v198
    %215 = vst [vmem:[#allocation7 + $0x2c] sm:$0xf] %v199
    %216 = vst [vmem:[#allocation7 + $0x30] sm:$0xf] %v200
    %217 = vst [vmem:[#allocation7 + $0x34] sm:$0xf] %v201
    %218 = vst [vmem:[#allocation7 + $0x38] sm:$0xf] %v202
    %219 = vst [vmem:[#allocation7 + $0x3c] sm:$0xf] %v203
    // Predicated region
    $region22: #{tpu_custom_call.1} parent=1 // pred_check
      _
    $region23: #{tpu_custom_call.1} parent=1 // pred_check_branch
      %221 = sbr.rel (0) target = $region25
    $region24: #{tpu_custom_call.1} parent=1 // pred_region
      %223 = vsyncadd [#allocation4], 0
      %s224 = sshll.u32 [#allocation7], 4
      %s225 = int_to_ptr.vmem [resolvable:$true] %s224
      %s226 = sshll.u32 %s3, 4
      %s227 = int_to_ptr.hbm [resolvable:$true] %s226
      %232 = dma.vmem_to_hbm [thread:$0]  %s225, 1024, %s227, [#allocation4], 64, 64, 4
    $region25: #{tpu_custom_call.1} parent=1 // pred_fallthru
      _
    // Predicated region
    $region26: #{tpu_custom_call.1} parent=1 // pred_check
      _
    $region27: #{tpu_custom_call.1} parent=1 // pred_check_branch
      %234 = sbr.rel (0) target = $region29
    $region28: #{tpu_custom_call.1} parent=1 // pred_region
      %236 = dma.done [#allocation4], 1024
    $region29: #{tpu_custom_call.1} parent=1 // pred_fallthru
      _
    %237 = vsyncpa [#allocation3], 1
    %238 = vsyncpa [#allocation6], 1
    %239 = vsyncpa [#allocation4], 1

</llo_original>
